<compile_context>
chip_gen: v7x
topology: tpu7x:2x2x1
jax: 0.10.0
libtpu: 0.0.40
codegen_flags: <defaults>
</compile_context>

<pallas_src>
import functools

import numpy as np
import jax
import jax.numpy as jnp
from jax.experimental import pallas as pl
from jax.experimental.pallas import tpu as pltpu


def _round_up(x: int, m: int) -> int:
    return (x + m - 1) // m * m


def _sublane_multiple(dtype) -> int:
    """Minimum second-to-last block dim for the dtype: f32->8, bf16->16, i8->32."""
    itemsize = jnp.dtype(dtype).itemsize
    return 8 * max(4 // itemsize, 1)


def _device_kind() -> str:
    try:
        return jax.devices()[0].device_kind.lower()
    except Exception:
        return ""


def _vmem_limit_bytes() -> int:
    kind = _device_kind()
    if "v7" in kind:
        return 48 << 20           # v7x: 64 MiB physical per TC, keep headroom
    if "v5" in kind or "v6" in kind:
        return 100 << 20          # v5e/v6e: 128 MiB physical VMEM
    return 48 << 20               # unknown: conservative (safe everywhere)


def _default_batch_tile() -> int:
    kind = _device_kind()
    if "v5" in kind or "v6" in kind:
        return 4096               # 128 MiB VMEM: go fatter per grid step
    return 2048                   # v7x (64 MiB VMEM) / unknown


def _cond_affine_kernel(z_ref, c_ref,
                        w1z_ref, wc_ref, b1_ref, w2z_ref, b2_ref,
                        x_ref, ld_ref, *,
                        n: int, d2: int, np_: int, d2p: int,
                        batch: int, tb: int,
                        reverse: bool, mask_tail: bool, mxu_dtype):
    z = z_ref[...].astype(jnp.float32)                       # (TB, D)
    c = c_ref[...].astype(jnp.float32)                       # (TB, C)

    if mask_tail:
        # Grid is cdiv(B, TB): the last block overhangs the batch. Zero the
        # overhanging rows so the (discarded) padded rows stay finite through
        # exp() and the matmuls; valid rows are untouched.
        row = pl.program_id(0) * tb + jax.lax.broadcasted_iota(jnp.int32, (tb, 1), 0)
        valid = row < batch
        z = jnp.where(valid, z, 0.0)
        c = jnp.where(valid, c, 0.0)

    # One fused conditioning matmul for both stages. wc columns are
    # [s1 | m1 | s2 | m2], each padded to a 128-lane boundary, so every slice
    # below starts on a vreg boundary (no XLU lane rotations).
    cc = jnp.dot(c.astype(mxu_dtype), wc_ref[...],
                 preferred_element_type=jnp.float32)          # (TB, 2*NP + 2*D2P)
    c1 = cc[:, : 2 * np_] + b1_ref[...]                       # (TB, 2*NP)
    c2 = cc[:, 2 * np_:] + b2_ref[...]                        # (TB, 2*D2P)

    def net1(v):   # fused [s1 | m1](v, c) -> (s1, m1), each (TB, n)
        sm = jnp.dot(v.astype(mxu_dtype), w1z_ref[...],
                     preferred_element_type=jnp.float32) + c1
        return sm[:, :n], sm[:, np_:np_ + n]

    def net2(v):   # fused [s2 | m2](v, c) -> (s2, m2), each (TB, d2)
        sm = jnp.dot(v.astype(mxu_dtype), w2z_ref[...],
                     preferred_element_type=jnp.float32) + c2
        return sm[:, :d2], sm[:, d2p:d2p + d2]

    if not reverse:
        z1 = z[:, :n]
        z2 = z[:, n:]
        s1, m1 = net1(z2)
        x1 = z1 * jnp.exp(s1) + m1
        s2, m2 = net2(x1)
        x2 = z2 * jnp.exp(s2) + m2
        out1, out2 = x1, x2
        ld = jnp.sum(s1, axis=1, keepdims=True) + jnp.sum(s2, axis=1, keepdims=True)
    else:
        x1 = z[:, :n]
        x2 = z[:, n:]
        s2, m2 = net2(x1)
        z2 = (x2 - m2) * jnp.exp(-s2)          # multiply by exp(-s); no divide
        s1, m1 = net1(z2)
        z1 = (x1 - m1) * jnp.exp(-s1)
        out1, out2 = z1, z2
        ld = -(jnp.sum(s1, axis=1, keepdims=True) + jnp.sum(s2, axis=1, keepdims=True))

    # Direct half stores: no in-kernel lane concat / extra VMEM temporary.
    x_ref[:, :n] = out1.astype(x_ref.dtype)
    x_ref[:, n:] = out2.astype(x_ref.dtype)
    ld_ref[...] = ld.astype(ld_ref.dtype)


def _run_cond_affine(z, c, params, *, n: int, np_: int, d2p: int,
                     reverse: bool, mxu_dtype, batch_tile=None):
    """Batch-tiled pallas_call wrapper (no pad/slice round trip)."""
    B, D = z.shape
    C = c.shape[1]
    d2 = D - n

    if batch_tile is None:
        batch_tile = _default_batch_tile()

    sub = _sublane_multiple(z.dtype)
    # Fat batch tiles amortize the ~0.35 us per-grid-step overhead; clamp to
    # the batch, and keep >= 2 grid steps whenever the batch allows so the
    # "parallel" grid axis gives both v7x TensorCores work.
    tb = _round_up(min(batch_tile, _round_up(B, sub)), sub)
    if tb >= B and B > sub:
        tb = _round_up(pl.cdiv(B, 2), sub)
    tb = max(tb, sub)
    grid = pl.cdiv(B, tb)
    mask_tail = (B % tb) != 0

    w1z, wc, b1, w2z, b2 = params
    kernel = functools.partial(
        _cond_affine_kernel, n=n, d2=d2, np_=np_, d2p=d2p,
        batch=B, tb=tb, reverse=reverse, mask_tail=mask_tail, mxu_dtype=mxu_dtype)

    def row_spec(cols):
        return pl.BlockSpec((tb, cols), lambda i: (i, 0))

    def resident_spec(arr):
        # Weights/biases stay resident in VMEM (constant block index).
        # TODO(synk): at production data_dim, add pipeline_mode=pl.Buffered(1)
        # here to single-buffer the resident weights inside v7x's 64 MiB VMEM.
        return pl.BlockSpec(arr.shape, lambda i: (0, 0))

    x, logdet = pl.pallas_call(
        kernel,
        out_shape=(
            jax.ShapeDtypeStruct((B, D), z.dtype),
            jax.ShapeDtypeStruct((B, 1), jnp.float32),
        ),
        grid=(grid,),
        in_specs=[
            row_spec(D),            # z tile
            row_spec(C),            # c tile
            resident_spec(w1z),
            resident_spec(wc),
            resident_spec(b1),
            resident_spec(w2z),
            resident_spec(b2),
        ],
        out_specs=(row_spec(D), row_spec(1)),
        compiler_params=pltpu.CompilerParams(
            dimension_semantics=("parallel",),          # batch rows independent
            vmem_limit_bytes=_vmem_limit_bytes(),       # generation-aware
        ),
    )(z, c, w1z, wc, b1, w2z, b2)
    return x, logdet[:, 0]


class ConditionalAffineCouplingLayerPallas:
    """JAX/Pallas port of the PyTorch ConditionalAffineCouplingLayer.

    s1,m1 : (data_dim - n + input_dim) -> n             (fused, lane-aligned)
    s2,m2 : (n + input_dim)            -> data_dim - n  (fused, lane-aligned)
    Fused column layout per stage is [s (pad to 128k) | m (pad to 128k)].
    """

    def __init__(self, input_dim: int, output_dim: int, n: int, key: jax.Array,
                 mxu_dtype=jnp.float32, batch_tile=None):
        assert 0 < n < output_dim
        self.input_dim = input_dim
        self.data_dim = output_dim
        self.n = n
        self.d2 = output_dim - n
        self.np_ = _round_up(self.n, 128)
        self.d2p = _round_up(self.d2, 128)
        self.mxu_dtype = mxu_dtype
        self.batch_tile = batch_tile

        d2, C = self.d2, input_dim
        keys = jax.random.split(key, 13)
        scale = 0.1  # keep exp(s) well-behaved at init
        norm = lambda k, s: scale * jax.random.normal(k, s, jnp.float32)

        # Un-padded per-net parameters (f32, used by the pure-JAX reference).
        self.w1z_s, self.w1z_m = norm(keys[0], (d2, n)), norm(keys[1], (d2, n))
        self.w1c_s, self.w1c_m = norm(keys[2], (C, n)), norm(keys[3], (C, n))
        self.b1_s, self.b1_m = norm(keys[4], (1, n)), norm(keys[5], (1, n))
        self.w2z_s, self.w2z_m = norm(keys[6], (n, d2)), norm(keys[7], (n, d2))
        self.w2c_s, self.w2c_m = norm(keys[8], (C, d2)), norm(keys[9], (C, d2))
        self.b2_s, self.b2_m = norm(keys[10], (1, d2)), norm(keys[11], (1, d2))

        # Fused, lane-aligned kernel weights.
        def padc(w, total):
            return jnp.pad(w, ((0, 0), (0, total - w.shape[1])))

        NP, D2P = self.np_, self.d2p
        self._w1z = jnp.concatenate(
            [padc(self.w1z_s, NP), padc(self.w1z_m, NP)], 1).astype(mxu_dtype)
        self._w2z = jnp.concatenate(
            [padc(self.w2z_s, D2P), padc(self.w2z_m, D2P)], 1).astype(mxu_dtype)
        self._wc = jnp.concatenate(
            [padc(self.w1c_s, NP), padc(self.w1c_m, NP),
             padc(self.w2c_s, D2P), padc(self.w2c_m, D2P)], 1).astype(mxu_dtype)
        self._b1 = jnp.concatenate([padc(self.b1_s, NP), padc(self.b1_m, NP)], 1)
        self._b2 = jnp.concatenate([padc(self.b2_s, D2P), padc(self.b2_m, D2P)], 1)

        # Parity with the PyTorch module: permutation tensors exist but are
        # NOT used anywhere in forward().
        perm = np.asarray(jax.random.permutation(keys[12], output_dim))
        inv = np.zeros(output_dim, dtype=np.int64)
        inv[perm] = np.arange(output_dim)
        self.permutation_tensor = jnp.asarray(perm, jnp.int32)
        self.reverse_permutation_tensor = jnp.asarray(inv, jnp.int32)

    def forward(self, c, z, reverse: bool = False):
        params = (self._w1z, self._wc, self._b1, self._w2z, self._b2)
        return _run_cond_affine(
            z, c, params, n=self.n, np_=self.np_, d2p=self.d2p,
            reverse=bool(reverse), mxu_dtype=self.mxu_dtype,
            batch_tile=self.batch_tile)


# ----------------------------- reference (pure JAX) -------------------------

def _reference_forward(layer, c, z, reverse=False):
    """Pure-JAX transcription of the PyTorch forward() (same mxu dtype)."""
    n = layer.n
    dt = layer.mxu_dtype

    def dot(a, w):
        return jnp.dot(a.astype(dt), w.astype(dt), preferred_element_type=jnp.float32)

    s1 = lambda v: dot(v, layer.w1z_s) + dot(c, layer.w1c_s) + layer.b1_s
    m1 = lambda v: dot(v, layer.w1z_m) + dot(c, layer.w1c_m) + layer.b1_m
    s2 = lambda v: dot(v, layer.w2z_s) + dot(c, layer.w2c_s) + layer.b2_s
    m2 = lambda v: dot(v, layer.w2z_m) + dot(c, layer.w2c_m) + layer.b2_m

    if not reverse:
        z1, z2 = z[:, :n], z[:, n:]
        sv1 = s1(z2)
        x1 = z1 * jnp.exp(sv1) + m1(z2)
        sv2 = s2(x1)
        x2 = z2 * jnp.exp(sv2) + m2(x1)
        return jnp.concatenate([x1, x2], 1), sv1.sum(1) + sv2.sum(1)
    else:
        x1, x2 = z[:, :n], z[:, n:]
        sv2 = s2(x1)
        z2 = (x2 - m2(x1)) / jnp.exp(sv2)
        sv1 = s1(z2)
        z1 = (x1 - m1(z2)) / jnp.exp(sv1)
        return jnp.concatenate([z1, z2], 1), -sv2.sum(1) - sv1.sum(1)


# ----------------------------------- test ------------------------------------

if __name__ == "__main__":
    key = jax.random.PRNGKey(0)
    k_layer, k_z, k_c, k_z2, k_c2, k_z3, k_c3 = jax.random.split(key, 7)

    batch, data_dim, input_dim, n = 8, 32, 8, 16
    layer = ConditionalAffineCouplingLayerPallas(input_dim, data_dim, n, k_layer)

    z = jax.random.normal(k_z, (batch, data_dim), dtype=jnp.float32)
    c = jax.random.normal(k_c, (batch, input_dim), dtype=jnp.float32)

    # Forward branch
    x, log_det = layer.forward(c, z, reverse=False)
    jax.block_until_ready((x, log_det))
    x_ref, log_det_ref = _reference_forward(layer, c, z, reverse=False)
    assert jnp.allclose(x, x_ref, atol=1e-4, rtol=1e-4)
    assert jnp.allclose(log_det, log_det_ref, atol=1e-4, rtol=1e-4)

    # Reverse branch + round trip
    z_rec, log_det_rev = layer.forward(c, x, reverse=True)
    jax.block_until_ready((z_rec, log_det_rev))
    z_rec_ref, log_det_rev_ref = _reference_forward(layer, c, x, reverse=True)
    assert jnp.allclose(z_rec, z_rec_ref, atol=1e-4, rtol=1e-4)
    assert jnp.allclose(log_det_rev, log_det_rev_ref, atol=1e-4, rtol=1e-4)
    assert jnp.allclose(z_rec, z, atol=1e-4, rtol=1e-4)
    assert jnp.allclose(log_det + log_det_rev, 0.0, atol=1e-4)

    # Ragged batch: exercises the no-pad cdiv grid + in-kernel tail mask.
    z_b = jax.random.normal(k_z2, (10, data_dim), dtype=jnp.float32)
    c_b = jax.random.normal(k_c2, (10, input_dim), dtype=jnp.float32)
    x_b, ld_b = layer.forward(c_b, z_b, reverse=False)
    jax.block_until_ready((x_b, ld_b))
    x_b_ref, ld_b_ref = _reference_forward(layer, c_b, z_b, reverse=False)
    assert jnp.allclose(x_b, x_b_ref, atol=1e-4, rtol=1e-4)
    assert jnp.allclose(ld_b, ld_b_ref, atol=1e-4, rtol=1e-4)

    # Multi-step grid with a ragged tail (explicit small batch_tile).
    layer_small_tile = ConditionalAffineCouplingLayerPallas(
        input_dim, data_dim, n, k_layer, batch_tile=16)
    z_m = jax.random.normal(k_z3, (40, data_dim), dtype=jnp.float32)
    c_m = jax.random.normal(k_c3, (40, input_dim), dtype=jnp.float32)
    x_m, ld_m = layer_small_tile.forward(c_m, z_m, reverse=False)
    jax.block_until_ready((x_m, ld_m))
    x_m_ref, ld_m_ref = _reference_forward(layer_small_tile, c_m, z_m, reverse=False)
    assert jnp.allclose(x_m, x_m_ref, atol=1e-4, rtol=1e-4)
    assert jnp.allclose(ld_m, ld_m_ref, atol=1e-4, rtol=1e-4)

    # Optional bf16-MXU path (production-size lever from the review):
    layer_bf16 = ConditionalAffineCouplingLayerPallas(
        input_dim, data_dim, n, k_layer, mxu_dtype=jnp.bfloat16)
    x_h, ld_h = layer_bf16.forward(c, z, reverse=False)
    jax.block_until_ready((x_h, ld_h))
    x_h_ref, ld_h_ref = _reference_forward(layer_bf16, c, z, reverse=False)
    assert jnp.allclose(x_h, x_h_ref, atol=3e-2, rtol=3e-2)
    assert jnp.allclose(ld_h, ld_h_ref, atol=3e-2, rtol=3e-2)

    print("KERNEL_OK")
</pallas_src>

<mosaic_0001>
module attributes {stable_mosaic.version = 11 : i64} {
  func.func @_cond_affine_kernel(%arg0: i32, %arg1: memref<8x32xf32, #tpu.memory_space<vmem>>, %arg2: memref<8x8xf32, #tpu.memory_space<vmem>>, %arg3: memref<16x256xf32, #tpu.memory_space<vmem>>, %arg4: memref<8x512xf32, #tpu.memory_space<vmem>>, %arg5: memref<1x256xf32, #tpu.memory_space<vmem>>, %arg6: memref<16x256xf32, #tpu.memory_space<vmem>>, %arg7: memref<1x256xf32, #tpu.memory_space<vmem>>, %arg8: memref<8x32xf32, #tpu.memory_space<vmem>>, %arg9: memref<8x1xf32, #tpu.memory_space<vmem>>) attributes {dimension_semantics = [#tpu.dimension_semantics<parallel>], iteration_bounds = array<i64: 1>, scalar_prefetch = 0 : i64, scratch_operands = 0 : i64, tpu.core_type = #tpu.core_type<tc>, window_params = [{transform_indices = @transform_0, window_bounds = array<i64: 8, 32>}, {transform_indices = @transform_1, window_bounds = array<i64: 8, 8>}, {pipeline_mode = #tpu.pipeline_mode<synchronous>, transform_indices = @transform_2, window_bounds = array<i64: 16, 256>}, {pipeline_mode = #tpu.pipeline_mode<synchronous>, transform_indices = @transform_3, window_bounds = array<i64: 8, 512>}, {pipeline_mode = #tpu.pipeline_mode<synchronous>, transform_indices = @transform_4, window_bounds = array<i64: 1, 256>}, {pipeline_mode = #tpu.pipeline_mode<synchronous>, transform_indices = @transform_5, window_bounds = array<i64: 16, 256>}, {pipeline_mode = #tpu.pipeline_mode<synchronous>, transform_indices = @transform_6, window_bounds = array<i64: 1, 256>}, {transform_indices = @transform_7, window_bounds = array<i64: 8, 32>}, {transform_indices = @transform_8, window_bounds = array<i64: 8, 1>}]} {
    %c0 = arith.constant 0 : index
    %c0_0 = arith.constant 0 : index
    %0 = vector.load %arg1[%c0, %c0_0] : memref<8x32xf32, #tpu.memory_space<vmem>>, vector<8x32xf32>
    %c0_1 = arith.constant 0 : index
    %c0_2 = arith.constant 0 : index
    %1 = vector.load %arg2[%c0_1, %c0_2] : memref<8x8xf32, #tpu.memory_space<vmem>>, vector<8x8xf32>
    %c0_3 = arith.constant 0 : index
    %c0_4 = arith.constant 0 : index
    %2 = vector.load %arg4[%c0_3, %c0_4] : memref<8x512xf32, #tpu.memory_space<vmem>>, vector<8x512xf32>
    %cst = arith.constant dense<0.000000e+00> : vector<8x512xf32>
    %3 = tpu.matmul %1, %2, %cst {dimension_numbers = #tpu.dot_dimension_numbers<[1], [0], [0], [1], [0, 0, 1, 1], [], []>} : vector<8x8xf32>, vector<8x512xf32>, vector<8x512xf32> -> vector<8x512xf32>
    %4 = vector.extract_strided_slice %3 {offsets = [0, 0], sizes = [8, 256], strides = [1, 1]} : vector<8x512xf32> to vector<8x256xf32>
    %c0_5 = arith.constant 0 : index
    %c0_6 = arith.constant 0 : index
    %5 = vector.load %arg5[%c0_5, %c0_6] : memref<1x256xf32, #tpu.memory_space<vmem>>, vector<1x256xf32>
    %6 = vector.broadcast %5 : vector<1x256xf32> to vector<8x256xf32>
    %7 = arith.addf %4, %6 : vector<8x256xf32>
    %8 = vector.extract_strided_slice %3 {offsets = [0, 256], sizes = [8, 256], strides = [1, 1]} : vector<8x512xf32> to vector<8x256xf32>
    %c0_7 = arith.constant 0 : index
    %c0_8 = arith.constant 0 : index
    %9 = vector.load %arg7[%c0_7, %c0_8] : memref<1x256xf32, #tpu.memory_space<vmem>>, vector<1x256xf32>
    %10 = vector.broadcast %9 : vector<1x256xf32> to vector<8x256xf32>
    %11 = arith.addf %8, %10 : vector<8x256xf32>
    %12 = vector.extract_strided_slice %0 {offsets = [0, 0], sizes = [8, 16], strides = [1, 1]} : vector<8x32xf32> to vector<8x16xf32>
    %13 = vector.extract_strided_slice %0 {offsets = [0, 16], sizes = [8, 16], strides = [1, 1]} : vector<8x32xf32> to vector<8x16xf32>
    %c0_9 = arith.constant 0 : index
    %c0_10 = arith.constant 0 : index
    %14 = vector.load %arg3[%c0_9, %c0_10] : memref<16x256xf32, #tpu.memory_space<vmem>>, vector<16x256xf32>
    %cst_11 = arith.constant dense<0.000000e+00> : vector<8x256xf32>
    %15 = tpu.matmul %13, %14, %cst_11 {dimension_numbers = #tpu.dot_dimension_numbers<[1], [0], [0], [1], [0, 0, 1, 1], [], []>} : vector<8x16xf32>, vector<16x256xf32>, vector<8x256xf32> -> vector<8x256xf32>
    %16 = arith.addf %15, %7 : vector<8x256xf32>
    %17 = vector.extract_strided_slice %16 {offsets = [0, 0], sizes = [8, 16], strides = [1, 1]} : vector<8x256xf32> to vector<8x16xf32>
    %18 = vector.extract_strided_slice %16 {offsets = [0, 128], sizes = [8, 16], strides = [1, 1]} : vector<8x256xf32> to vector<8x16xf32>
    %19 = math.exp %17 : vector<8x16xf32>
    %20 = arith.mulf %12, %19 : vector<8x16xf32>
    %21 = arith.addf %20, %18 : vector<8x16xf32>
    %c0_12 = arith.constant 0 : index
    %c0_13 = arith.constant 0 : index
    %22 = vector.load %arg6[%c0_12, %c0_13] : memref<16x256xf32, #tpu.memory_space<vmem>>, vector<16x256xf32>
    %cst_14 = arith.constant dense<0.000000e+00> : vector<8x256xf32>
    %23 = tpu.matmul %21, %22, %cst_14 {dimension_numbers = #tpu.dot_dimension_numbers<[1], [0], [0], [1], [0, 0, 1, 1], [], []>} : vector<8x16xf32>, vector<16x256xf32>, vector<8x256xf32> -> vector<8x256xf32>
    %24 = arith.addf %23, %11 : vector<8x256xf32>
    %25 = vector.extract_strided_slice %24 {offsets = [0, 0], sizes = [8, 16], strides = [1, 1]} : vector<8x256xf32> to vector<8x16xf32>
    %26 = vector.extract_strided_slice %24 {offsets = [0, 128], sizes = [8, 16], strides = [1, 1]} : vector<8x256xf32> to vector<8x16xf32>
    %27 = math.exp %25 : vector<8x16xf32>
    %28 = arith.mulf %13, %27 : vector<8x16xf32>
    %29 = arith.addf %28, %26 : vector<8x16xf32>
    %cst_15 = arith.constant dense<0.000000e+00> : vector<8xf32>
    %30 = vector.multi_reduction <add>, %17, %cst_15 [1] : vector<8x16xf32> to vector<8xf32>
    %31 = vector.shape_cast %30 : vector<8xf32> to vector<8x1xf32>
    %cst_16 = arith.constant dense<0.000000e+00> : vector<8xf32>
    %32 = vector.multi_reduction <add>, %25, %cst_16 [1] : vector<8x16xf32> to vector<8xf32>
    %33 = vector.shape_cast %32 : vector<8xf32> to vector<8x1xf32>
    %34 = arith.addf %31, %33 : vector<8x1xf32>
    %c0_17 = arith.constant 0 : index
    %c0_18 = arith.constant 0 : index
    %35 = vector.load %arg8[%c0_17, %c0_18] : memref<8x32xf32, #tpu.memory_space<vmem>>, vector<8x16xf32>
    tpu.vector_store %arg8[%c0_17, %c0_18], %21 {strides = array<i32>} : memref<8x32xf32, #tpu.memory_space<vmem>>, vector<8x16xf32>,
    %c0_19 = arith.constant 0 : index
    %c16 = arith.constant 16 : index
    %36 = vector.load %arg8[%c0_19, %c16] : memref<8x32xf32, #tpu.memory_space<vmem>>, vector<8x16xf32>
    tpu.vector_store %arg8[%c0_19, %c16], %29 {strides = array<i32>} : memref<8x32xf32, #tpu.memory_space<vmem>>, vector<8x16xf32>,
    %c0_20 = arith.constant 0 : index
    %c0_21 = arith.constant 0 : index
    %37 = vector.load %arg9[%c0_20, %c0_21] : memref<8x1xf32, #tpu.memory_space<vmem>>, vector<8x1xf32>
    tpu.vector_store %arg9[%c0_20, %c0_21], %34 {strides = array<i32>} : memref<8x1xf32, #tpu.memory_space<vmem>>, vector<8x1xf32>,
    return
  }
  func.func @transform_0(%arg0: i32) -> (i32, i32) {
    %c0_i32 = arith.constant 0 : i32
    %c0_i32_0 = arith.constant 0 : i32
    return %arg0, %c0_i32 : i32, i32
  }
  func.func @transform_1(%arg0: i32) -> (i32, i32) {
    %c0_i32 = arith.constant 0 : i32
    %c0_i32_0 = arith.constant 0 : i32
    return %arg0, %c0_i32 : i32, i32
  }
  func.func @transform_2(%arg0: i32) -> (i32, i32) {
    %c0_i32 = arith.constant 0 : i32
    %c0_i32_0 = arith.constant 0 : i32
    %c0_i32_1 = arith.constant 0 : i32
    return %c0_i32, %c0_i32_0 : i32, i32
  }
  func.func @transform_3(%arg0: i32) -> (i32, i32) {
    %c0_i32 = arith.constant 0 : i32
    %c0_i32_0 = arith.constant 0 : i32
    %c0_i32_1 = arith.constant 0 : i32
    return %c0_i32, %c0_i32_0 : i32, i32
  }
  func.func @transform_4(%arg0: i32) -> (i32, i32) {
    %c0_i32 = arith.constant 0 : i32
    %c0_i32_0 = arith.constant 0 : i32
    %c0_i32_1 = arith.constant 0 : i32
    return %c0_i32, %c0_i32_0 : i32, i32
  }
  func.func @transform_5(%arg0: i32) -> (i32, i32) {
    %c0_i32 = arith.constant 0 : i32
    %c0_i32_0 = arith.constant 0 : i32
    %c0_i32_1 = arith.constant 0 : i32
    return %c0_i32, %c0_i32_0 : i32, i32
  }
  func.func @transform_6(%arg0: i32) -> (i32, i32) {
    %c0_i32 = arith.constant 0 : i32
    %c0_i32_0 = arith.constant 0 : i32
    %c0_i32_1 = arith.constant 0 : i32
    return %c0_i32, %c0_i32_0 : i32, i32
  }
  func.func @transform_7(%arg0: i32) -> (i32, i32) {
    %c0_i32 = arith.constant 0 : i32
    %c0_i32_0 = arith.constant 0 : i32
    return %arg0, %c0_i32 : i32, i32
  }
  func.func @transform_8(%arg0: i32) -> (i32, i32) {
    %c0_i32 = arith.constant 0 : i32
    %c0_i32_0 = arith.constant 0 : i32
    return %arg0, %c0_i32 : i32, i32
  }
}

</mosaic_0001>

<llo_original>
// kernel: tpu_custom_call.1
$region0: #{tpu_custom_call.1}
  #allocation0 [shape = 'u32[]', space=smem, size = 0x4, offset = 0x4, fixed_abs, tag = 'smem constant byte address 0x4 - core index']
  #allocation1 [shape = 'u32[144,128]{1,0:T(1,128)}', space=vmem, size = 0x12000, scoped, tag = 'internal scratch']
  %s0 = inlined_call_operand.hbm [shape: f32[8,32], index: 0, kind: input, shape index: {}]
  %s1 = inlined_call_operand.hbm [shape: f32[8,8], index: 1, kind: input, shape index: {}]
  %s2 = inlined_call_operand.hbm [shape: f32[16,256], index: 2, kind: input, shape index: {}]
  %s3 = inlined_call_operand.hbm [shape: f32[8,512], index: 3, kind: input, shape index: {}]
  %s4 = inlined_call_operand.vmem [shape: f32[1,256], index: 4, kind: input, shape index: {}]
  %s5 = inlined_call_operand.hbm [shape: f32[16,256], index: 5, kind: input, shape index: {}]
  %s6 = inlined_call_operand.vmem [shape: f32[1,256], index: 6, kind: input, shape index: {}]
  %s7 = inlined_call_operand.hbm [shape: f32[8,32], index: 7, kind: output, shape index: {0}]
  %s8 = inlined_call_operand.vmem [shape: f32[8,1], index: 8, kind: output, shape index: {1}]
  %9 = xla_tuple %s7, %s8
  %s10 = sld [smem:[#allocation0]]
  $region66: #{tpu_custom_call.1} parent=0
    _
  %s12 = ssub.s32 1, %s10
  %s13 = scalar_select 0, %s12, %s10
  $region1: #{tpu_custom_call.1} parent=0
    #allocation2 [shape = 'u8[4096]{0}', space=vmem, size = 0x1000, scoped, tag = 'input window, operand 0, single buffered']
    #allocation3 [shape = 's32[1]{0}', space=sflag, size = 0x4, scoped, tag = 'scoped memory for tpu_custom_call.1']
    #allocation4 [shape = 's32[1]{0}', space=sflag, size = 0x4, scoped, tag = 'scoped memory for tpu_custom_call.1']
    #allocation5 [shape = 'u8[4096]{0}', space=vmem, size = 0x1000, scoped, tag = 'input window, operand 1, single buffered']
    #allocation6 [shape = 's32[1]{0}', space=sflag, size = 0x4, scoped, tag = 'scoped memory for tpu_custom_call.1']
    #allocation7 [shape = 'u8[16384]{0}', space=vmem, size = 0x4000, scoped, tag = 'input window, operand 2, single buffered']
    #allocation8 [shape = 'u8[16384]{0}', space=vmem, size = 0x4000, scoped, tag = 'input window, operand 3, single buffered']
    #allocation9 [shape = 's32[1]{0}', space=sflag, size = 0x4, scoped, tag = 'scoped memory for tpu_custom_call.1']
    #allocation10 [shape = 'u8[16384]{0}', space=vmem, size = 0x4000, scoped, tag = 'input window, operand 5, single buffered']
    #allocation11 [shape = 'u8[4096]{0}', space=vmem, size = 0x1000, scoped, tag = 'output window, operand 0, single buffered']
    %14 = vsyncpa [#allocation3], 0
    %15 = vsyncpa [#allocation6], 0
    %16 = vsyncpa [#allocation9], 0
    %17 = vsyncpa [#allocation4], 0
    // Predicated region
    $region2: #{tpu_custom_call.1} parent=1 // pred_check
      _
    $region3: #{tpu_custom_call.1} parent=1 // pred_check_branch
      %19 = sbr.rel (0) target = $region5
    $region4: #{tpu_custom_call.1} parent=1 // pred_region
      %s21 = ssub.s32 128, 128
      %22 = vsyncadd [#allocation3], %s21
      %s24 = sshll.u32 [#allocation2], 4
      %s25 = int_to_ptr.vmem [resolvable:$true] %s24
      %27 = dma.hbm_to_vmem [thread:$0]  %s0, 128, %s25, [#allocation3]
    $region5: #{tpu_custom_call.1} parent=1 // pred_fallthru
      _
    // Predicated region
    $region6: #{tpu_custom_call.1} parent=1 // pred_check
      _
    $region7: #{tpu_custom_call.1} parent=1 // pred_check_branch
      %29 = sbr.rel (0) target = $region9
    $region8: #{tpu_custom_call.1} parent=1 // pred_region
      %s31 = ssub.s32 128, 128
      %32 = vsyncadd [#allocation6], %s31
      %s34 = sshll.u32 [#allocation5], 4
      %s35 = int_to_ptr.vmem [resolvable:$true] %s34
      %37 = dma.hbm_to_vmem [thread:$0]  %s1, 128, %s35, [#allocation6]
    $region9: #{tpu_custom_call.1} parent=1 // pred_fallthru
      _
    // Predicated region
    $region10: #{tpu_custom_call.1} parent=1 // pred_check
      _
    $region11: #{tpu_custom_call.1} parent=1 // pred_check_branch
      %39 = sbr.rel (0) target = $region13
    $region12: #{tpu_custom_call.1} parent=1 // pred_region
      %s41 = ssub.s32 512, 512
      %42 = vsyncadd [#allocation6], %s41
      %s43 = sshll.u32 [#allocation7], 4
      %s44 = int_to_ptr.vmem [resolvable:$true] %s43
      %49 = dma.hbm_to_vmem [thread:$0]  %s2, 512, %s44, [#allocation6], 256, 256, 16
    $region13: #{tpu_custom_call.1} parent=1 // pred_fallthru
      _
    // Predicated region
    $region14: #{tpu_custom_call.1} parent=1 // pred_check
      _
    $region15: #{tpu_custom_call.1} parent=1 // pred_check_branch
      %51 = sbr.rel (0) target = $region17
    $region16: #{tpu_custom_call.1} parent=1 // pred_region
      %s53 = ssub.s32 512, 512
      %54 = vsyncadd [#allocation9], %s53
      %s56 = sshll.u32 [#allocation8], 4
      %s57 = int_to_ptr.vmem [resolvable:$true] %s56
      %59 = dma.hbm_to_vmem [thread:$0]  %s3, 512, %s57, [#allocation9]
    $region17: #{tpu_custom_call.1} parent=1 // pred_fallthru
      _
    // Predicated region
    $region18: #{tpu_custom_call.1} parent=1 // pred_check
      _
    $region19: #{tpu_custom_call.1} parent=1 // pred_check_branch
      %61 = sbr.rel (0) target = $region21
    $region20: #{tpu_custom_call.1} parent=1 // pred_region
      _
    $region21: #{tpu_custom_call.1} parent=1 // pred_fallthru
      _
    // Predicated region
    $region22: #{tpu_custom_call.1} parent=1 // pred_check
      _
    $region23: #{tpu_custom_call.1} parent=1 // pred_check_branch
      %63 = sbr.rel (0) target = $region25
    $region24: #{tpu_custom_call.1} parent=1 // pred_region
      %s65 = ssub.s32 512, 512
      %66 = vsyncadd [#allocation9], %s65
      %s67 = sshll.u32 [#allocation10], 4
      %s68 = int_to_ptr.vmem [resolvable:$true] %s67
      %73 = dma.hbm_to_vmem [thread:$0]  %s5, 512, %s68, [#allocation9], 256, 256, 16
    $region25: #{tpu_custom_call.1} parent=1 // pred_fallthru
      _
    // Predicated region
    $region26: #{tpu_custom_call.1} parent=1 // pred_check
      _
    $region27: #{tpu_custom_call.1} parent=1 // pred_check_branch
      %75 = sbr.rel (0) target = $region29
    $region28: #{tpu_custom_call.1} parent=1 // pred_region
      _
    $region29: #{tpu_custom_call.1} parent=1 // pred_fallthru
      _
    // Predicated region
    $region30: #{tpu_custom_call.1} parent=1 // pred_check
      _
    $region31: #{tpu_custom_call.1} parent=1 // pred_check_branch
      %77 = sbr.rel (0) target = $region33
    $region32: #{tpu_custom_call.1} parent=1 // pred_region
      %78 = dma.done [#allocation3], 128
    $region33: #{tpu_custom_call.1} parent=1 // pred_fallthru
      _
    // Predicated region
    $region34: #{tpu_custom_call.1} parent=1 // pred_check
      _
    $region35: #{tpu_custom_call.1} parent=1 // pred_check_branch
      %80 = sbr.rel (0) target = $region37
    $region36: #{tpu_custom_call.1} parent=1 // pred_region
      %81 = dma.done [#allocation6], 128
    $region37: #{tpu_custom_call.1} parent=1 // pred_fallthru
      _
    // Predicated region
    $region38: #{tpu_custom_call.1} parent=1 // pred_check
      _
    $region39: #{tpu_custom_call.1} parent=1 // pred_check_branch
      %83 = sbr.rel (0) target = $region41
    $region40: #{tpu_custom_call.1} parent=1 // pred_region
      %84 = dma.done [#allocation6], 512
    $region41: #{tpu_custom_call.1} parent=1 // pred_fallthru
      _
    // Predicated region
    $region42: #{tpu_custom_call.1} parent=1 // pred_check
      _
    $region43: #{tpu_custom_call.1} parent=1 // pred_check_branch
      %86 = sbr.rel (0) target = $region45
    $region44: #{tpu_custom_call.1} parent=1 // pred_region
      %87 = dma.done [#allocation9], 512
    $region45: #{tpu_custom_call.1} parent=1 // pred_fallthru
      _
    // Predicated region
    $region46: #{tpu_custom_call.1} parent=1 // pred_check
      _
    $region47: #{tpu_custom_call.1} parent=1 // pred_check_branch
      %89 = sbr.rel (0) target = $region49
    $region48: #{tpu_custom_call.1} parent=1 // pred_region
      %90 = dma.done [#allocation9], 512
    $region49: #{tpu_custom_call.1} parent=1 // pred_fallthru
      _
    %v91 = vld [vmem:[#allocation2] sm:$0xff]
    %v92 = vld [vmem:[#allocation5] sm:$0xff]
    %v93 = vld [vmem:[#allocation8] sm:$0xff]
    %v94 = vld [vmem:[#allocation8 + $0x8] sm:$0xff]
    %v95 = vld [vmem:[#allocation8 + $0x10] sm:$0xff]
    %v96 = vld [vmem:[#allocation8 + $0x18] sm:$0xff]
    %vm97 = vcmask 64512
    %v99 = vsel %vm97, %v92, 0
    %101 = vmatprep.subr.mxu0 %v94
    %102 = vmatpush1.msra.mxu0 %v93
    %103 = vmatprep.subr.mxu0 0.0
    %104 = vmatpush1.msra.mxu0 0.0
    %105 = vmatprep.subr.mxu0 0.0
    %106 = vmatpush1.msra.mxu0 0.0
    %107 = vmatprep.subr.mxu0 0.0
    %108 = vmatpush1.msra.mxu0 0.0
    %109 = vmatprep.subr.mxu0 0.0
    %110 = vmatpush1.msra.mxu0 0.0
    %111 = vmatprep.subr.mxu0 0.0
    %112 = vmatpush1.msra.mxu0 0.0
    %113 = vmatprep.subr.mxu0 0.0
    %114 = vmatpush1.msra.mxu0 0.0
    %115 = vmatprep.subr.mxu0 0.0
    %116 = vmatpush1.msra.mxu0 0.0
    %117 = vmatprep.subr.mxu0 0.0
    %118 = vmatpush1.msra.mxu0 0.0
    %119 = vmatprep.subr.mxu0 0.0
    %120 = vmatpush1.msra.mxu0 0.0
    %121 = vmatprep.subr.mxu0 0.0
    %122 = vmatpush1.msra.mxu0 0.0
    %123 = vmatprep.subr.mxu0 0.0
    %124 = vmatpush1.msra.mxu0 0.0
    %125 = vmatprep.subr.mxu0 0.0
    %126 = vmatpush1.msra.mxu0 0.0
    %127 = vmatprep.subr.mxu0 0.0
    %128 = vmatpush1.msra.mxu0 0.0
    %129 = vmatprep.subr.mxu0 0.0
    %130 = vmatpush1.msra.mxu0 0.0
    %131 = vmatprep.subr.mxu0 0.0
    %132 = vmatpush1.msra.mxu0 0.0
    %133 = vmatprep.subr.mxu0 0.0
    %134 = vmatpush1.msra.mxu0 0.0
    %135 = vmatprep.subr.mxu0 0.0
    %136 = vmatpush1.msra.mxu0 0.0
    %137 = vmatprep.subr.mxu0 0.0
    %138 = vmatpush1.msra.mxu0 0.0
    %139 = vmatprep.subr.mxu0 0.0
    %140 = vmatpush1.msra.mxu0 0.0
    %141 = vmatprep.subr.mxu0 0.0
    %142 = vmatpush1.msra.mxu0 0.0
    %143 = vmatprep.subr.mxu0 0.0
    %144 = vmatpush1.msra.mxu0 0.0
    %145 = vmatprep.subr.mxu0 0.0
    %146 = vmatpush1.msra.mxu0 0.0
    %147 = vmatprep.subr.mxu0 0.0
    %148 = vmatpush1.msra.mxu0 0.0
    %149 = vmatprep.subr.mxu0 0.0
    %150 = vmatpush1.msra.mxu0 0.0
    %151 = vmatprep.subr.mxu0 0.0
    %152 = vmatpush1.msra.mxu0 0.0
    %153 = vmatprep.subr.mxu0 0.0
    %154 = vmatpush1.msra.mxu0 0.0
    %155 = vmatprep.subr.mxu0 0.0
    %156 = vmatpush1.msra.mxu0 0.0
    %157 = vmatprep.subr.mxu0 0.0
    %158 = vmatpush1.msra.mxu0 0.0
    %159 = vmatprep.subr.mxu0 0.0
    %160 = vmatpush1.msra.mxu0 0.0
    %161 = vmatprep.subr.mxu0 0.0
    %162 = vmatpush1.msra.mxu0 0.0
    %163 = vmatprep.subr.mxu0 0.0
    %164 = vmatpush1.msra.mxu0 0.0
    %165 = vmatprep.mubr.f32.mxu0 0.0
    %166 = vmatmul.mubr.f32.gmra.mrb[0].mxu0 %v99
    %v167 = vpop.f32.mrb[0].mxu0
    %v168 = vadd.f32 0.0, %v167
    %v169 = vpop.f32.mrb[0].mxu0
    %v170 = vadd.f32 0.0, %v169
    %171 = vdwg.mxu0
    %172 = vmatprep.subr.mxu0 %v96
    %173 = vmatpush1.msra.mxu0 %v95
    %174 = vmatprep.subr.mxu0 0.0
    %175 = vmatpush1.msra.mxu0 0.0
    %176 = vmatprep.subr.mxu0 0.0
    %177 = vmatpush1.msra.mxu0 0.0
    %178 = vmatprep.subr.mxu0 0.0
    %179 = vmatpush1.msra.mxu0 0.0
    %180 = vmatprep.subr.mxu0 0.0
    %181 = vmatpush1.msra.mxu0 0.0
    %182 = vmatprep.subr.mxu0 0.0
    %183 = vmatpush1.msra.mxu0 0.0
    %184 = vmatprep.subr.mxu0 0.0
    %185 = vmatpush1.msra.mxu0 0.0
    %186 = vmatprep.subr.mxu0 0.0
    %187 = vmatpush1.msra.mxu0 0.0
    %188 = vmatprep.subr.mxu0 0.0
    %189 = vmatpush1.msra.mxu0 0.0
    %190 = vmatprep.subr.mxu0 0.0
    %191 = vmatpush1.msra.mxu0 0.0
    %192 = vmatprep.subr.mxu0 0.0
    %193 = vmatpush1.msra.mxu0 0.0
    %194 = vmatprep.subr.mxu0 0.0
    %195 = vmatpush1.msra.mxu0 0.0
    %196 = vmatprep.subr.mxu0 0.0
    %197 = vmatpush1.msra.mxu0 0.0
    %198 = vmatprep.subr.mxu0 0.0
    %199 = vmatpush1.msra.mxu0 0.0
    %200 = vmatprep.subr.mxu0 0.0
    %201 = vmatpush1.msra.mxu0 0.0
    %202 = vmatprep.subr.mxu0 0.0
    %203 = vmatpush1.msra.mxu0 0.0
    %204 = vmatprep.subr.mxu0 0.0
    %205 = vmatpush1.msra.mxu0 0.0
    %206 = vmatprep.subr.mxu0 0.0
    %207 = vmatpush1.msra.mxu0 0.0
    %208 = vmatprep.subr.mxu0 0.0
    %209 = vmatpush1.msra.mxu0 0.0
    %210 = vmatprep.subr.mxu0 0.0
    %211 = vmatpush1.msra.mxu0 0.0
    %212 = vmatprep.subr.mxu0 0.0
    %213 = vmatpush1.msra.mxu0 0.0
    %214 = vmatprep.subr.mxu0 0.0
    %215 = vmatpush1.msra.mxu0 0.0
    %216 = vmatprep.subr.mxu0 0.0
    %217 = vmatpush1.msra.mxu0 0.0
    %218 = vmatprep.subr.mxu0 0.0
    %219 = vmatpush1.msra.mxu0 0.0
    %220 = vmatprep.subr.mxu0 0.0
    %221 = vmatpush1.msra.mxu0 0.0
    %222 = vmatprep.subr.mxu0 0.0
    %223 = vmatpush1.msra.mxu0 0.0
    %224 = vmatprep.subr.mxu0 0.0
    %225 = vmatpush1.msra.mxu0 0.0
    %226 = vmatprep.subr.mxu0 0.0
    %227 = vmatpush1.msra.mxu0 0.0
    %228 = vmatprep.subr.mxu0 0.0
    %229 = vmatpush1.msra.mxu0 0.0
    %230 = vmatprep.subr.mxu0 0.0
    %231 = vmatpush1.msra.mxu0 0.0
    %232 = vmatprep.subr.mxu0 0.0
    %233 = vmatpush1.msra.mxu0 0.0
    %234 = vmatprep.subr.mxu0 0.0
    %235 = vmatpush1.msra.mxu0 0.0
    %236 = vmatprep.mubr.f32.mxu0 0.0
    %237 = vmatmul.mubr.f32.gmra.mrb[0].mxu0 %v99
    %v238 = vpop.f32.mrb[0].mxu0
    %v239 = vadd.f32 0.0, %v238
    %v240 = vpop.f32.mrb[0].mxu0
    %v241 = vadd.f32 0.0, %v240
    %242 = vdwg.mxu0
    %v243 = vld [vmem:[%s4] sm:$0x3]
    %v245 = vlaneseq
    %v246 = vshrl.u32 %v245, 7
    %v247 = vsub.s32 0, %v246
    %v248 = vrot.slane %v243, %v247
    %v249 = vlaneseq
    %v250 = vshrl.u32 %v249, 7
    %v251 = vsub.s32 1, %v250
    %v252 = vrot.slane %v243, %v251
    %v255 = vadd.f32 %v168, %v248
    %v256 = vadd.f32 %v170, %v252
    %v257 = vld [vmem:[%s6] sm:$0x3]
    %v259 = vlaneseq
    %v260 = vshrl.u32 %v259, 7
    %v261 = vsub.s32 0, %v260
    %v262 = vrot.slane %v257, %v261
    %v263 = vlaneseq
    %v264 = vshrl.u32 %v263, 7
    %v265 = vsub.s32 1, %v264
    %v266 = vrot.slane %v257, %v265
    %v269 = vadd.f32 %v239, %v262
    %v270 = vadd.f32 %v241, %v266
    %v271 = vld [vmem:[#allocation7] sm:$0xff]
    %v272 = vld [vmem:[#allocation7 + $0x8] sm:$0xff]
    %v273 = vld [vmem:[#allocation7 + $0x10] sm:$0xff]
    %v274 = vld [vmem:[#allocation7 + $0x18] sm:$0xff]
    %276 = vrot.lane.b32.xlu0 %v91, 112
    %v277 = vpop.permute.xlu0 %276
    %vm278 = vcmask 130048
    %v279 = vsel %vm278, %v277, 0
    %281 = vmatprep.subr.mxu0 %v272
    %282 = vmatpush1.msra.mxu0 %v271
    %283 = vmatprep.subr.mxu0 %v274
    %284 = vmatpush1.msra.mxu0 %v273
    %285 = vmatprep.subr.mxu0 0.0
    %286 = vmatpush1.msra.mxu0 0.0
    %287 = vmatprep.subr.mxu0 0.0
    %288 = vmatpush1.msra.mxu0 0.0
    %289 = vmatprep.subr.mxu0 0.0
    %290 = vmatpush1.msra.mxu0 0.0
    %291 = vmatprep.subr.mxu0 0.0
    %292 = vmatpush1.msra.mxu0 0.0
    %293 = vmatprep.subr.mxu0 0.0
    %294 = vmatpush1.msra.mxu0 0.0
    %295 = vmatprep.subr.mxu0 0.0
    %296 = vmatpush1.msra.mxu0 0.0
    %297 = vmatprep.subr.mxu0 0.0
    %298 = vmatpush1.msra.mxu0 0.0
    %299 = vmatprep.subr.mxu0 0.0
    %300 = vmatpush1.msra.mxu0 0.0
    %301 = vmatprep.subr.mxu0 0.0
    %302 = vmatpush1.msra.mxu0 0.0
    %303 = vmatprep.subr.mxu0 0.0
    %304 = vmatpush1.msra.mxu0 0.0
    %305 = vmatprep.subr.mxu0 0.0
    %306 = vmatpush1.msra.mxu0 0.0
    %307 = vmatprep.subr.mxu0 0.0
    %308 = vmatpush1.msra.mxu0 0.0
    %309 = vmatprep.subr.mxu0 0.0
    %310 = vmatpush1.msra.mxu0 0.0
    %311 = vmatprep.subr.mxu0 0.0
    %312 = vmatpush1.msra.mxu0 0.0
    %313 = vmatprep.subr.mxu0 0.0
    %314 = vmatpush1.msra.mxu0 0.0
    %315 = vmatprep.subr.mxu0 0.0
    %316 = vmatpush1.msra.mxu0 0.0
    %317 = vmatprep.subr.mxu0 0.0
    %318 = vmatpush1.msra.mxu0 0.0
    %319 = vmatprep.subr.mxu0 0.0
    %320 = vmatpush1.msra.mxu0 0.0
    %321 = vmatprep.subr.mxu0 0.0
    %322 = vmatpush1.msra.mxu0 0.0
    %323 = vmatprep.subr.mxu0 0.0
    %324 = vmatpush1.msra.mxu0 0.0
    %325 = vmatprep.subr.mxu0 0.0
    %326 = vmatpush1.msra.mxu0 0.0
    %327 = vmatprep.subr.mxu0 0.0
    %328 = vmatpush1.msra.mxu0 0.0
    %329 = vmatprep.subr.mxu0 0.0
    %330 = vmatpush1.msra.mxu0 0.0
    %331 = vmatprep.subr.mxu0 0.0
    %332 = vmatpush1.msra.mxu0 0.0
    %333 = vmatprep.subr.mxu0 0.0
    %334 = vmatpush1.msra.mxu0 0.0
    %335 = vmatprep.subr.mxu0 0.0
    %336 = vmatpush1.msra.mxu0 0.0
    %337 = vmatprep.subr.mxu0 0.0
    %338 = vmatpush1.msra.mxu0 0.0
    %339 = vmatprep.subr.mxu0 0.0
    %340 = vmatpush1.msra.mxu0 0.0
    %341 = vmatprep.subr.mxu0 0.0
    %342 = vmatpush1.msra.mxu0 0.0
    %343 = vmatprep.subr.mxu0 0.0
    %344 = vmatpush1.msra.mxu0 0.0
    %345 = vmatprep.mubr.f32.mxu0 0.0
    %346 = vmatmul.mubr.f32.gmra.mrb[0].mxu0 %v279
    %v347 = vpop.f32.mrb[0].mxu0
    %v348 = vadd.f32 %v255, %v347
    %v349 = vpop.f32.mrb[0].mxu0
    %v350 = vadd.f32 %v256, %v349
    %351 = vdwg.mxu0
    %v352 = vmul.f32 %v348, 1.442695
    %v353 = vpow.pop %v352
    %v354 = vmul.f32 %v91, %v353
    %v355 = vadd.f32 %v354, %v350
    %v356 = vld [vmem:[#allocation10] sm:$0xff]
    %v357 = vld [vmem:[#allocation10 + $0x8] sm:$0xff]
    %v358 = vld [vmem:[#allocation10 + $0x10] sm:$0xff]
    %v359 = vld [vmem:[#allocation10 + $0x18] sm:$0xff]
    %v361 = vsel %vm278, %v355, 0
    %363 = vmatprep.subr.mxu0 %v357
    %364 = vmatpush1.msra.mxu0 %v356
    %365 = vmatprep.subr.mxu0 %v359
    %366 = vmatpush1.msra.mxu0 %v358
    %367 = vmatprep.subr.mxu0 0.0
    %368 = vmatpush1.msra.mxu0 0.0
    %369 = vmatprep.subr.mxu0 0.0
    %370 = vmatpush1.msra.mxu0 0.0
    %371 = vmatprep.subr.mxu0 0.0
    %372 = vmatpush1.msra.mxu0 0.0
    %373 = vmatprep.subr.mxu0 0.0
    %374 = vmatpush1.msra.mxu0 0.0
    %375 = vmatprep.subr.mxu0 0.0
    %376 = vmatpush1.msra.mxu0 0.0
    %377 = vmatprep.subr.mxu0 0.0
    %378 = vmatpush1.msra.mxu0 0.0
    %379 = vmatprep.subr.mxu0 0.0
    %380 = vmatpush1.msra.mxu0 0.0
    %381 = vmatprep.subr.mxu0 0.0
    %382 = vmatpush1.msra.mxu0 0.0
    %383 = vmatprep.subr.mxu0 0.0
    %384 = vmatpush1.msra.mxu0 0.0
    %385 = vmatprep.subr.mxu0 0.0
    %386 = vmatpush1.msra.mxu0 0.0
    %387 = vmatprep.subr.mxu0 0.0
    %388 = vmatpush1.msra.mxu0 0.0
    %389 = vmatprep.subr.mxu0 0.0
    %390 = vmatpush1.msra.mxu0 0.0
    %391 = vmatprep.subr.mxu0 0.0
    %392 = vmatpush1.msra.mxu0 0.0
    %393 = vmatprep.subr.mxu0 0.0
    %394 = vmatpush1.msra.mxu0 0.0
    %395 = vmatprep.subr.mxu0 0.0
    %396 = vmatpush1.msra.mxu0 0.0
    %397 = vmatprep.subr.mxu0 0.0
    %398 = vmatpush1.msra.mxu0 0.0
    %399 = vmatprep.subr.mxu0 0.0
    %400 = vmatpush1.msra.mxu0 0.0
    %401 = vmatprep.subr.mxu0 0.0
    %402 = vmatpush1.msra.mxu0 0.0
    %403 = vmatprep.subr.mxu0 0.0
    %404 = vmatpush1.msra.mxu0 0.0
    %405 = vmatprep.subr.mxu0 0.0
    %406 = vmatpush1.msra.mxu0 0.0
    %407 = vmatprep.subr.mxu0 0.0
    %408 = vmatpush1.msra.mxu0 0.0
    %409 = vmatprep.subr.mxu0 0.0
    %410 = vmatpush1.msra.mxu0 0.0
    %411 = vmatprep.subr.mxu0 0.0
    %412 = vmatpush1.msra.mxu0 0.0
    %413 = vmatprep.subr.mxu0 0.0
    %414 = vmatpush1.msra.mxu0 0.0
    %415 = vmatprep.subr.mxu0 0.0
    %416 = vmatpush1.msra.mxu0 0.0
    %417 = vmatprep.subr.mxu0 0.0
    %418 = vmatpush1.msra.mxu0 0.0
    %419 = vmatprep.subr.mxu0 0.0
    %420 = vmatpush1.msra.mxu0 0.0
    %421 = vmatprep.subr.mxu0 0.0
    %422 = vmatpush1.msra.mxu0 0.0
    %423 = vmatprep.subr.mxu0 0.0
    %424 = vmatpush1.msra.mxu0 0.0
    %425 = vmatprep.subr.mxu0 0.0
    %426 = vmatpush1.msra.mxu0 0.0
    %427 = vmatprep.mubr.f32.mxu0 0.0
    %428 = vmatmul.mubr.f32.gmra.mrb[0].mxu0 %v361
    %v429 = vpop.f32.mrb[0].mxu0
    %v430 = vadd.f32 %v269, %v429
    %v431 = vpop.f32.mrb[0].mxu0
    %v432 = vadd.f32 %v270, %v431
    %433 = vdwg.mxu0
    %v434 = vmul.f32 %v430, 1.442695
    %v435 = vpow.pop %v434
    %437 = vrot.lane.b32.xlu0 %v435, 16
    %v438 = vpop.permute.xlu0 %437
    %v440 = vmul.f32 %v91, %v438
    %442 = vrot.lane.b32.xlu0 %v432, 16
    %v443 = vpop.permute.xlu0 %442
    %v445 = vadd.f32 %v440, %v443
    %v446 = vsel %vm278, %v348, 0.0
    %447 = vadd.xlane.f32.xlu0 %v446
    %v448 = vpop.xlane.xlu0 %447
    %v449 = vsel %vm278, %v430, 0.0
    %450 = vadd.xlane.f32.xlu0 %v449
    %v451 = vpop.xlane.xlu0 %450
    %v452 = vadd.f32 %v448, %v451
    %453 = vst.msk [vmem:[#allocation11] sm:$0xff] %vm278, %v355
    %vm454 = vcmask 261248
    %455 = vst.msk [vmem:[#allocation11] sm:$0xff] %vm454, %v445
    %vm456 = vcmask 7168
    %457 = vst.msk [vmem:[%s8] sm:$0xff] %vm456, %v452
    // Predicated region
    $region50: #{tpu_custom_call.1} parent=1 // pred_check
      _
    $region51: #{tpu_custom_call.1} parent=1 // pred_check_branch
      %459 = sbr.rel (0) target = $region53
    $region52: #{tpu_custom_call.1} parent=1 // pred_region
      %s461 = ssub.s32 128, 128
      %462 = vsyncadd [#allocation4], %s461
      %s464 = sshll.u32 [#allocation11], 4
      %s465 = int_to_ptr.vmem [resolvable:$true] %s464
      %467 = dma.vmem_to_hbm [thread:$0]  %s465, 128, %s7, [#allocation4]
    $region53: #{tpu_custom_call.1} parent=1 // pred_fallthru
      _
    // Predicated region
    $region54: #{tpu_custom_call.1} parent=1 // pred_check
      _
    $region55: #{tpu_custom_call.1} parent=1 // pred_check_branch
      %469 = sbr.rel (0) target = $region57
    $region56: #{tpu_custom_call.1} parent=1 // pred_region
      _
    $region57: #{tpu_custom_call.1} parent=1 // pred_fallthru
      _
    // Predicated region
    $region58: #{tpu_custom_call.1} parent=1 // pred_check
      _
    $region59: #{tpu_custom_call.1} parent=1 // pred_check_branch
      %471 = sbr.rel (0) target = $region61
    $region60: #{tpu_custom_call.1} parent=1 // pred_region
      %472 = dma.done [#allocation4], 128
    $region61: #{tpu_custom_call.1} parent=1 // pred_fallthru
      _
    // Predicated region
    $region62: #{tpu_custom_call.1} parent=1 // pred_check
      _
    $region63: #{tpu_custom_call.1} parent=1 // pred_check_branch
      %474 = sbr.rel (0) target = $region65
    $region64: #{tpu_custom_call.1} parent=1 // pred_region
      _
    $region65: #{tpu_custom_call.1} parent=1 // pred_fallthru
      _
    %475 = vsyncpa [#allocation3], 1
    %476 = vsyncpa [#allocation6], 1
    %477 = vsyncpa [#allocation9], 1
    %478 = vsyncpa [#allocation4], 1

</llo_original>
